<compile_context>
chip_gen: v7x
topology: tpu7x:2x2x1
jax: 0.10.0
libtpu: 0.0.40
codegen_flags: <defaults>
</compile_context>

<pallas_src>
import functools

import numpy as np

import jax
import jax.numpy as jnp
from jax.experimental import pallas as pl
from jax.experimental.pallas import tpu as pltpu


# ---------------------------------------------------------------------------
# Tiling heuristics
# ---------------------------------------------------------------------------

_VMEM_OUT_BUDGET = 16 * 1024 * 1024   # 2 outputs x 2 pipeline buffers
_MAX_TILE_ROWS = 2048                 # diminishing returns past ~1-2k rows
_MAX_GROUPS = 8                       # row groups per tile (angle-addition dedup)


def _round_up(x, m):
    return ((x + m - 1) // m) * m


def _round_down(x, m):
    return (x // m) * m


def _num_tensorcores():
    """Best-effort TensorCore-per-device count (v7x = 2, v5e/v6e = 1)."""
    try:
        dev = jax.devices()[0]
        kind = str(getattr(dev, "device_kind", "")).lower()
        if "v7" in kind:
            return 2
        nc = getattr(dev, "num_cores", None)
        if nc:
            return int(nc)
    except Exception:
        pass
    return 1


def _pick_tile(total_rows, out_width, itemsize, num_cores):
    sublane = max(8, 32 // itemsize)           # 8 for f32, 16 for bf16
    align = sublane * _MAX_GROUPS
    cap = _VMEM_OUT_BUDGET // (4 * out_width * itemsize)
    cap = max(align, _round_down(cap, align))
    cap = min(cap, _MAX_TILE_ROWS)
    if total_rows <= align:
        # Tiny cache: single block covering the whole array (no artificial split).
        return total_rows, 1
    if num_cores > 1:
        # Balanced, even step count across TensorCores (v7x).
        n_steps = max(num_cores, pl.cdiv(total_rows, cap))
        n_steps = _round_up(n_steps, num_cores)
        tile = min(cap, _round_up(pl.cdiv(total_rows, n_steps), align))
        return tile, pl.cdiv(total_rows, tile)
    # Single TensorCore (v5e/v6e): biggest tile that fits, no forced split.
    if total_rows <= cap:
        if total_rows % align == 0:
            return total_rows, 1
        tile = _round_down(total_rows, align)
        return tile, pl.cdiv(total_rows, tile)
    return cap, pl.cdiv(total_rows, cap)


def _pick_groups(tile, sublane):
    g = _MAX_GROUPS
    while g > 1 and tile % (g * sublane) != 0:
        g //= 2
    return g if tile % (g * sublane) == 0 else 1


# ---------------------------------------------------------------------------
# Kernel
# ---------------------------------------------------------------------------

def _rope_groups_kernel(tab_ref, rot_ref, cos_ref, sin_ref, *,
                        num_groups, half_width):
    # tab_ref: (num_groups, 2, W) f32 constants
    #   page 0   : (A, B)  with  arg(row, lane) = row * A[lane] + B[lane]
    #   page g>0 : (cos(g*rg*A), sin(g*rg*A))   group-offset rotation
    # rot_ref: (1, 2, W) per-grid-step rotation (cos/sin of the tile start angle)
    # cos/sin_ref: (tile, W) or (tile, 2W) when half_width (duplicate halves)
    rows = cos_ref.shape[0]
    rg = rows // num_groups

    tab = tab_ref[...]
    rot = rot_ref[...]
    a = tab[0, 0:1, :]                                   # (1, W)
    b = tab[0, 1:2, :]                                   # (1, W)

    # Local (small) arguments for the base group only.
    r = jax.lax.broadcasted_iota(jnp.int32, (rg, 1), 0).astype(jnp.float32)
    arg = r * a + b                                      # (rg, W)
    c_loc = jnp.cos(arg)
    s_loc = jnp.sin(arg)

    # Rotate to the tile's absolute position (host-exact f64 constants).
    c_rot = rot[0, 0:1, :]
    s_rot = rot[0, 1:2, :]
    c0 = c_loc * c_rot - s_loc * s_rot
    s0 = s_loc * c_rot + c_loc * s_rot

    def emit(g, cg, sg):
        lo = g * rg
        c = cg.astype(cos_ref.dtype)
        s = sg.astype(sin_ref.dtype)
        if half_width:
            w = cg.shape[1]
            cos_ref[lo:lo + rg, :w] = c
            cos_ref[lo:lo + rg, w:] = c
            sin_ref[lo:lo + rg, :w] = s
            sin_ref[lo:lo + rg, w:] = s
        else:
            cos_ref[lo:lo + rg, :] = c
            sin_ref[lo:lo + rg, :] = s

    emit(0, c0, s0)
    # Remaining groups are pure VALU reconstructions (no transcendentals).
    for g in range(1, num_groups):
        cd = tab[g, 0:1, :]
        sd = tab[g, 1:2, :]
        emit(g, c0 * cd - s0 * sd, s0 * cd + c0 * sd)


# ---------------------------------------------------------------------------
# Wrapper (equivalent of LlamaRotaryEmbedding.forward -> (cos, sin))
# ---------------------------------------------------------------------------

def llama_rotary_embedding(seq_len, dim, *, base=10000.0, dtype=jnp.float32):
    """Returns (cos, sin), each of shape (1, 1, seq_len, dim) in `dtype`."""
    assert dim % 2 == 0, "head dim must be even"
    itemsize = jnp.dtype(dtype).itemsize
    sublane = max(8, 32 // itemsize)
    num_cores = _num_tensorcores()

    inv_freq = 1.0 / (float(base) ** (np.arange(0, dim, 2, dtype=np.float64)
                                      / float(dim)))                # (dim//2,)

    packed = (dim < 128) and (128 % dim == 0) and ((seq_len * dim) % 128 == 0)
    if packed:
        # Lane-dense packed slab: element (r, l) is flat index r*128 + l of the
        # row-major (seq, dim) cache, so pos = r*per_row + l//dim and
        # freq = inv_freq[l % (dim//2)].
        width = 128
        out_width = 128
        per_row = 128 // dim
        total_rows = (seq_len * dim) // 128
        f_lane = np.tile(inv_freq, 2 * per_row)
        lane_pos = (np.arange(128) // dim).astype(np.float64)
        a_row = per_row * f_lane                 # d(arg) / d(packed row)
        b_row = lane_pos * f_lane                # per-lane base offset
        half_width = False
    elif dim % 256 == 0:
        # cat(freqs, freqs) symmetry with lane-aligned halves.
        width = dim // 2
        out_width = dim
        total_rows = seq_len
        a_row = inv_freq.copy()
        b_row = np.zeros((width,), dtype=np.float64)
        half_width = True
    else:
        width = dim
        out_width = dim
        total_rows = seq_len
        a_row = np.concatenate([inv_freq, inv_freq])
        b_row = np.zeros((width,), dtype=np.float64)
        half_width = False

    tile, grid_n = _pick_tile(total_rows, out_width, itemsize, num_cores)
    num_groups = _pick_groups(tile, sublane)
    rg = tile // num_groups

    # Constant table: page 0 = (A, B); page g >= 1 = group-offset rotation.
    pages = [np.stack([a_row, b_row])]
    for g in range(1, num_groups):
        ang = (g * rg) * a_row
        pages.append(np.stack([np.cos(ang), np.sin(ang)]))
    tab = jnp.asarray(np.stack(pages).astype(np.float32))     # (k, 2, width)

    # Per-grid-step rotation (tile start angle), exact in f64 on host.
    rot_np = np.empty((grid_n, 2, width), dtype=np.float64)
    for i in range(grid_n):
        ang = (i * tile) * a_row
        rot_np[i, 0] = np.cos(ang)
        rot_np[i, 1] = np.sin(ang)
    rot = jnp.asarray(rot_np.astype(np.float32))              # (grid_n, 2, width)

    kernel = functools.partial(_rope_groups_kernel,
                               num_groups=num_groups, half_width=half_width)

    flops = 12 * total_rows * out_width
    transcendentals = 2 * grid_n * rg * width
    bytes_accessed = (2 * total_rows * out_width * itemsize
                      + int(tab.size) * 4 + int(rot.size) * 4)

    cos2d, sin2d = pl.pallas_call(
        kernel,
        out_shape=(jax.ShapeDtypeStruct((total_rows, out_width), dtype),
                   jax.ShapeDtypeStruct((total_rows, out_width), dtype)),
        grid_spec=pltpu.PrefetchScalarGridSpec(
            num_scalar_prefetch=0,
            grid=(grid_n,),
            in_specs=[pl.BlockSpec((num_groups, 2, width), lambda i: (0, 0, 0)),
                      pl.BlockSpec((1, 2, width), lambda i: (i, 0, 0))],
            out_specs=[pl.BlockSpec((tile, out_width), lambda i: (i, 0)),
                       pl.BlockSpec((tile, out_width), lambda i: (i, 0))],
        ),
        compiler_params=pltpu.CompilerParams(
            dimension_semantics=("parallel",),
            vmem_limit_bytes=32 * 1024 * 1024,
        ),
        cost_estimate=pl.CostEstimate(flops=flops,
                                      transcendentals=transcendentals,
                                      bytes_accessed=bytes_accessed),
    )(tab, rot)

    if packed:
        cos2d = cos2d.reshape(seq_len, dim)
        sin2d = sin2d.reshape(seq_len, dim)
    cos = cos2d.reshape(1, 1, seq_len, dim)
    sin = sin2d.reshape(1, 1, seq_len, dim)
    return cos, sin


# ---------------------------------------------------------------------------
# float64 host reference (PyTorch _set_cos_sin_cache semantics)
# ---------------------------------------------------------------------------

def _reference_np(seq_len, dim, base=10000.0):
    inv_freq = 1.0 / (base ** (np.arange(0, dim, 2, dtype=np.float64) / dim))
    t = np.arange(seq_len, dtype=np.float64)
    freqs = np.einsum("i,j->ij", t, inv_freq)
    emb = np.concatenate([freqs, freqs], axis=-1)
    return np.cos(emb)[None, None], np.sin(emb)[None, None]


if __name__ == "__main__":
    # Shapes consistent with the module's forward: x is (batch, heads, seq, head_dim).
    batch, heads, seq_len, dim = 2, 4, 8, 32
    key = jax.random.PRNGKey(0)
    x = jax.random.normal(key, (batch, heads, seq_len, dim), dtype=jnp.float32)

    def run_and_check(seq, d, dtype=jnp.float32, tol=2e-4):
        cos, sin = llama_rotary_embedding(seq, d, dtype=dtype)
        jax.block_until_ready((cos, sin))
        cos_ref, sin_ref = _reference_np(seq, d)
        assert cos.shape == (1, 1, seq, d) and sin.shape == (1, 1, seq, d)
        assert cos.dtype == dtype and sin.dtype == dtype
        cos_np = np.asarray(cos.astype(jnp.float32), dtype=np.float64)
        sin_np = np.asarray(sin.astype(jnp.float32), dtype=np.float64)
        assert np.allclose(cos_np, cos_ref, atol=tol, rtol=tol), (seq, d, dtype)
        assert np.allclose(sin_np, sin_ref, atol=tol, rtol=tol), (seq, d, dtype)

    # Main case matching x (dim < 128 -> lane-dense packed path, tiny single block).
    run_and_check(seq_len, dim, dtype=x.dtype)
    # Standard Llama head dim: full-width path, 8 row-groups.
    run_and_check(128, 128)
    # Half-symmetric lane-aligned path (dim % 256 == 0).
    run_and_check(64, 256)
    # Packed path with multiple row-groups, multi-step grid and partial last tile.
    run_and_check(520, 64)
    # Module default config (max_position_embeddings = 2048).
    run_and_check(2048, 128)
    # bf16 cache build (halves writeback bytes on store-bound v5e).
    run_and_check(64, 128, dtype=jnp.bfloat16, tol=2e-2)

    print("KERNEL_OK")
</pallas_src>

<mosaic_0001>
module attributes {stable_mosaic.version = 11 : i64} {
  func.func @_rope_groups_kernel(%arg0: i32, %arg1: memref<1x2x128xf32, #tpu.memory_space<vmem>>, %arg2: memref<1x2x128xf32, #tpu.memory_space<vmem>>, %arg3: memref<2x128xf32, #tpu.memory_space<vmem>>, %arg4: memref<2x128xf32, #tpu.memory_space<vmem>>) attributes {dimension_semantics = [#tpu.dimension_semantics<parallel>], iteration_bounds = array<i64: 1>, scalar_prefetch = 0 : i64, scratch_operands = 0 : i64, tpu.core_type = #tpu.core_type<tc>, window_params = [{pipeline_mode = #tpu.pipeline_mode<synchronous>, transform_indices = @transform_0, window_bounds = array<i64: 1, 2, 128>}, {transform_indices = @transform_1, window_bounds = array<i64: 1, 2, 128>}, {transform_indices = @transform_2, window_bounds = array<i64: 2, 128>}, {transform_indices = @transform_3, window_bounds = array<i64: 2, 128>}]} {
    %c0 = arith.constant 0 : index
    %c0_0 = arith.constant 0 : index
    %c0_1 = arith.constant 0 : index
    %0 = vector.load %arg1[%c0, %c0_0, %c0_1] : memref<1x2x128xf32, #tpu.memory_space<vmem>>, vector<1x2x128xf32>
    %c0_2 = arith.constant 0 : index
    %c0_3 = arith.constant 0 : index
    %c0_4 = arith.constant 0 : index
    %1 = vector.load %arg2[%c0_2, %c0_3, %c0_4] : memref<1x2x128xf32, #tpu.memory_space<vmem>>, vector<1x2x128xf32>
    %2 = vector.extract_strided_slice %0 {offsets = [0, 0, 0], sizes = [1, 1, 128], strides = [1, 1, 1]} : vector<1x2x128xf32> to vector<1x1x128xf32>
    %3 = vector.shape_cast %2 : vector<1x1x128xf32> to vector<1x128xf32>
    %4 = vector.extract_strided_slice %0 {offsets = [0, 1, 0], sizes = [1, 1, 128], strides = [1, 1, 1]} : vector<1x2x128xf32> to vector<1x1x128xf32>
    %5 = vector.shape_cast %4 : vector<1x1x128xf32> to vector<1x128xf32>
    %6 = tpu.iota {dimensions = array<i32: 0>} : vector<2x1xi32>
    %7 = arith.sitofp %6 : vector<2x1xi32> to vector<2x1xf32>
    %8 = vector.broadcast %7 : vector<2x1xf32> to vector<2x128xf32>
    %9 = vector.broadcast %3 : vector<1x128xf32> to vector<2x128xf32>
    %10 = arith.mulf %8, %9 : vector<2x128xf32>
    %11 = vector.broadcast %5 : vector<1x128xf32> to vector<2x128xf32>
    %12 = arith.addf %10, %11 : vector<2x128xf32>
    %13 = math.cos %12 : vector<2x128xf32>
    %14 = math.sin %12 : vector<2x128xf32>
    %15 = vector.extract_strided_slice %1 {offsets = [0, 0, 0], sizes = [1, 1, 128], strides = [1, 1, 1]} : vector<1x2x128xf32> to vector<1x1x128xf32>
    %16 = vector.shape_cast %15 : vector<1x1x128xf32> to vector<1x128xf32>
    %17 = vector.extract_strided_slice %1 {offsets = [0, 1, 0], sizes = [1, 1, 128], strides = [1, 1, 1]} : vector<1x2x128xf32> to vector<1x1x128xf32>
    %18 = vector.shape_cast %17 : vector<1x1x128xf32> to vector<1x128xf32>
    %19 = vector.broadcast %16 : vector<1x128xf32> to vector<2x128xf32>
    %20 = arith.mulf %13, %19 : vector<2x128xf32>
    %21 = vector.broadcast %18 : vector<1x128xf32> to vector<2x128xf32>
    %22 = arith.mulf %14, %21 : vector<2x128xf32>
    %23 = arith.subf %20, %22 : vector<2x128xf32>
    %24 = vector.broadcast %16 : vector<1x128xf32> to vector<2x128xf32>
    %25 = arith.mulf %14, %24 : vector<2x128xf32>
    %26 = vector.broadcast %18 : vector<1x128xf32> to vector<2x128xf32>
    %27 = arith.mulf %13, %26 : vector<2x128xf32>
    %28 = arith.addf %25, %27 : vector<2x128xf32>
    %c0_5 = arith.constant 0 : index
    %c0_6 = arith.constant 0 : index
    %29 = vector.load %arg3[%c0_5, %c0_6] : memref<2x128xf32, #tpu.memory_space<vmem>>, vector<2x128xf32>
    tpu.vector_store %arg3[%c0_5, %c0_6], %23 {strides = array<i32>} : memref<2x128xf32, #tpu.memory_space<vmem>>, vector<2x128xf32>,
    %c0_7 = arith.constant 0 : index
    %c0_8 = arith.constant 0 : index
    %30 = vector.load %arg4[%c0_7, %c0_8] : memref<2x128xf32, #tpu.memory_space<vmem>>, vector<2x128xf32>
    tpu.vector_store %arg4[%c0_7, %c0_8], %28 {strides = array<i32>} : memref<2x128xf32, #tpu.memory_space<vmem>>, vector<2x128xf32>,
    return
  }
  func.func @transform_0(%arg0: i32) -> (i32, i32, i32) {
    %c0_i32 = arith.constant 0 : i32
    %c0_i32_0 = arith.constant 0 : i32
    %c0_i32_1 = arith.constant 0 : i32
    %c0_i32_2 = arith.constant 0 : i32
    return %c0_i32, %c0_i32_0, %c0_i32_1 : i32, i32, i32
  }
  func.func @transform_1(%arg0: i32) -> (i32, i32, i32) {
    %c0_i32 = arith.constant 0 : i32
    %c0_i32_0 = arith.constant 0 : i32
    %c0_i32_1 = arith.constant 0 : i32
    return %arg0, %c0_i32, %c0_i32_0 : i32, i32, i32
  }
  func.func @transform_2(%arg0: i32) -> (i32, i32) {
    %c0_i32 = arith.constant 0 : i32
    %c0_i32_0 = arith.constant 0 : i32
    return %arg0, %c0_i32 : i32, i32
  }
  func.func @transform_3(%arg0: i32) -> (i32, i32) {
    %c0_i32 = arith.constant 0 : i32
    %c0_i32_0 = arith.constant 0 : i32
    return %arg0, %c0_i32 : i32, i32
  }
}

</mosaic_0001>

<llo_original>
// kernel: tpu_custom_call.1
$region0: #{tpu_custom_call.1}
  #allocation0 [shape = 'u32[]', space=smem, size = 0x4, offset = 0x4, fixed_abs, tag = 'smem constant byte address 0x4 - core index']
  #allocation1 [shape = 'u32[144,128]{1,0:T(1,128)}', space=vmem, size = 0x12000, scoped, tag = 'internal scratch']
  %s0 = inlined_call_operand.hbm [shape: f32[1,2,128], index: 0, kind: input, shape index: {}]
  %s1 = inlined_call_operand.vmem [shape: f32[1,2,128], index: 1, kind: input, shape index: {}]
  %s2 = inlined_call_operand.hbm [shape: f32[2,128], index: 2, kind: output, shape index: {0}]
  %s3 = inlined_call_operand.hbm [shape: f32[2,128], index: 3, kind: output, shape index: {1}]
  %4 = xla_tuple %s2, %s3
  %s5 = sld [smem:[#allocation0]]
  $region30: #{tpu_custom_call.1} parent=0
    _
  %s7 = ssub.s32 1, %s5
  %s8 = scalar_select 0, %s7, %s5
  $region1: #{tpu_custom_call.1} parent=0
    #allocation2 [shape = 'u8[1024]{0}', space=vmem, size = 0x400, scoped, tag = 'input window, operand 0, single buffered']
    #allocation3 [shape = 's32[1]{0}', space=sflag, size = 0x4, scoped, tag = 'scoped memory for tpu_custom_call.1']
    #allocation4 [shape = 's32[1]{0}', space=sflag, size = 0x4, scoped, tag = 'scoped memory for tpu_custom_call.1']
    #allocation5 [shape = 'u8[1024]{0}', space=vmem, size = 0x400, scoped, tag = 'output window, operand 0, single buffered']
    #allocation6 [shape = 'u8[1024]{0}', space=vmem, size = 0x400, scoped, tag = 'output window, operand 1, single buffered']
    #allocation7 [shape = 's32[1]{0}', space=sflag, size = 0x4, scoped, tag = 'scoped memory for tpu_custom_call.1']
    %9 = vsyncpa [#allocation3], 0
    %10 = vsyncpa [#allocation4], 0
    %11 = vsyncpa [#allocation7], 0
    // Predicated region
    $region2: #{tpu_custom_call.1} parent=1 // pred_check
      _
    $region3: #{tpu_custom_call.1} parent=1 // pred_check_branch
      %13 = sbr.rel (0) target = $region5
    $region4: #{tpu_custom_call.1} parent=1 // pred_region
      %s15 = ssub.s32 32, 32
      %16 = vsyncadd [#allocation3], %s15
      %s18 = sshll.u32 [#allocation2], 4
      %s19 = int_to_ptr.vmem [resolvable:$true] %s18
      %21 = dma.hbm_to_vmem [thread:$0]  %s0, 32, %s19, [#allocation3]
    $region5: #{tpu_custom_call.1} parent=1 // pred_fallthru
      _
    // Predicated region
    $region6: #{tpu_custom_call.1} parent=1 // pred_check
      _
    $region7: #{tpu_custom_call.1} parent=1 // pred_check_branch
      %23 = sbr.rel (0) target = $region9
    $region8: #{tpu_custom_call.1} parent=1 // pred_region
      _
    $region9: #{tpu_custom_call.1} parent=1 // pred_fallthru
      _
    // Predicated region
    $region10: #{tpu_custom_call.1} parent=1 // pred_check
      _
    $region11: #{tpu_custom_call.1} parent=1 // pred_check_branch
      %25 = sbr.rel (0) target = $region13
    $region12: #{tpu_custom_call.1} parent=1 // pred_region
      %26 = dma.done [#allocation3], 32
    $region13: #{tpu_custom_call.1} parent=1 // pred_fallthru
      _
    %v27 = vld [vmem:[#allocation2] sm:$0x3]
    %v28 = vld [vmem:[%s1] sm:$0x3]
    %v29 = vlaneseq
    %v30 = vshrl.u32 %v29, 7
    %v31 = vcvt.s32.f32 %v30
    %v32 = vlaneseq
    %v33 = vshrl.u32 %v32, 7
    %v34 = vsub.s32 0, %v33
    %v35 = vrot.slane %v27, %v34
    %v36 = vmul.f32 %v31, %v35
    %v37 = vlaneseq
    %v38 = vshrl.u32 %v37, 7
    %v39 = vsub.s32 1, %v38
    %v40 = vrot.slane %v27, %v39
    %v41 = vadd.f32 %v36, %v40
    %v42 = vand.u32 2147483647, %v41
    %vm43 = vcmp.le.f32.partialorder %v42, 0.7853982
    %vm44 = vcmp.lt.s32.totalorder %v41, 0
    %v45 = vand.u32 %v41, 2139095040
    %v46 = vshrl.u32 %v45, 23
    %v47 = vsub.s32 %v46, 127
    %v48 = vand.u32 2147483647, %v41
    %v49 = vand.u32 %v48, 8388607
    %v50 = vor.u32 %v49, 8388608
    %v51 = vsub.s32 0, %v50
    %v52 = vadd.s32 %v47, 1
    %vm53 = vcmp.gt.s32.totalorder %v52, 0
    %v54 = vsel %vm53, %v52, 0
    %v55 = vshrl.u32 %v54, 5
    %v56 = vand.u32 %v54, 31
    %v57 = vsub.s32 32, %v56
    %v58 = vshrl.u32 683565275, %v57
    %v59 = vshll.u32 683565275, %v56
    %v60 = vshrl.u32 2475754826, %v57
    %v61 = vor.u32 %v59, %v60
    %v62 = vshll.u32 2475754826, %v56
    %v63 = vshrl.u32 2131351028, %v57
    %v64 = vor.u32 %v62, %v63
    %v65 = vshll.u32 2131351028, %v56
    %v66 = vshrl.u32 2102212464, %v57
    %v67 = vor.u32 %v65, %v66
    %v68 = vshll.u32 2102212464, %v56
    %v69 = vshrl.u32 920167782, %v57
    %v70 = vor.u32 %v68, %v69
    %v71 = vshll.u32 920167782, %v56
    %v72 = vshrl.u32 1326507024, %v57
    %v73 = vor.u32 %v71, %v72
    %vm74 = vcmp.lt.s32.totalorder %v55, 1
    %vm75 = vcmp.lt.s32.totalorder %v55, 2
    %vm76 = vcmp.lt.s32.totalorder %v55, 3
    %vm77 = vcmp.lt.s32.totalorder %v55, 4
    %v78 = vsel %vm74, %v58, %v61
    %v79 = vsel %vm77, %v67, 2102212464
    %v80 = vsel %vm76, %v64, %v79
    %v81 = vsel %vm75, %v78, %v80
    %v82 = vsel %vm74, %v61, %v64
    %v83 = vsel %vm77, %v70, 920167782
    %v84 = vsel %vm76, %v67, %v83
    %v85 = vsel %vm75, %v82, %v84
    %v86 = vsel %vm74, %v64, %v67
    %v87 = vsel %vm77, %v73, 1326507024
    %v88 = vsel %vm76, %v70, %v87
    %v89 = vsel %vm75, %v86, %v88
    %v90 = vshll.u32 %v50, 8
    %v91 = vmul.u32.u64.compose %v90, %v89
    %v92 = vextract.low.u32 %v91
    %v93 = vextract.high.u32 %v91
    %v94 = vmul.u32.u64.compose %v90, %v85
    %v95 = vextract.low.u32 %v94
    %v96 = vextract.high.u32 %v94
    %v97 = vmul.u32 %v90, %v81
    %v98 = vadd.s32 %v93, %v95
    %vm99 = vc.u32 %v93, %v95
    %v100 = vadd.s32 %v96, 1
    %v101 = vsel %vm99, %v100, %v96
    %v102 = vadd.s32 %v97, %v101
    %v103 = vadd.s32 %v102, 536870912
    %v104 = vshrl.u32 %v103, 30
    %v105 = vshll.u32 %v104, 30
    %v106 = vsub.s32 %v102, %v105
    %vm107 = vcmp.lt.s32.totalorder %v106, 0
    %v108 = vsub.s32 0, %v106
    %v109 = vsel %vm107, %v108, %v106
    %v110 = vclz %v109
    %v111 = vsub.s32 %v110, 2
    %vm112 = vcmp.gt.s32.totalorder 0, %v111
    %v113 = vsel %vm112, 0, %v111
    %v114 = vsub.s32 32, %v113
    %v115 = vshll.u32 %v106, %v113
    %v116 = vshrl.u32 %v98, %v114
    %v117 = vor.u32 %v115, %v116
    %v118 = vsub.s32 4294967266, %v113
    %v119 = vadd.s32 %v118, 127
    %v120 = vshll.u32 %v119, 23
    %v121 = vor.u32 4788187, %v120
    %v122 = vand.u32 2147483647, %v121
    %v124 = vcvt.s32.f32 %v117
    %v125 = vmul.f32 %v124, %v122
    %v126 = vxor.u32 %v125, 2147483648
    %v127 = vsel %vm44, %v126, %v125
    %v128 = vsub.s32 4, %v104
    %v129 = vsel %vm44, %v128, %v104
    %v130 = vsel %vm43, %v41, %v127
    %v131 = vsel %vm43, 0, %v129
    %v132 = vcosq.f32.pop %v130
    %v133 = vsinq.f32.pop %v130
    %vm134 = vweird.f32 %v41
    %v135 = vand.u32 %v131, 3
    %vm136 = vcmp.lt.s32.totalorder %v135, 2
    %vm137 = vcmp.eq.s32.totalorder %v135, 0
    %v138 = vxor.u32 %v133, 2147483648
    %v139 = vsel %vm137, %v132, %v138
    %vm140 = vcmp.eq.s32.totalorder %v135, 2
    %v141 = vxor.u32 %v132, 2147483648
    %v142 = vsel %vm140, %v141, %v133
    %v143 = vsel %vm136, %v139, %v142
    %v144 = vsel %vm134, nan, %v143
    %v145 = vand.u32 2147483647, %v41
    %vm146 = vcmp.le.f32.partialorder %v145, 0.7853982
    %vm147 = vcmp.lt.s32.totalorder %v41, 0
    %v148 = vand.u32 %v41, 2139095040
    %v149 = vshrl.u32 %v148, 23
    %v150 = vsub.s32 %v149, 127
    %v151 = vand.u32 2147483647, %v41
    %v152 = vand.u32 %v151, 8388607
    %v153 = vor.u32 %v152, 8388608
    %v154 = vsub.s32 0, %v153
    %v155 = vadd.s32 %v150, 1
    %vm156 = vcmp.gt.s32.totalorder %v155, 0
    %v157 = vsel %vm156, %v155, 0
    %v158 = vshrl.u32 %v157, 5
    %v159 = vand.u32 %v157, 31
    %v160 = vsub.s32 32, %v159
    %v161 = vshrl.u32 683565275, %v160
    %v162 = vshll.u32 683565275, %v159
    %v163 = vshrl.u32 2475754826, %v160
    %v164 = vor.u32 %v162, %v163
    %v165 = vshll.u32 2475754826, %v159
    %v166 = vshrl.u32 2131351028, %v160
    %v167 = vor.u32 %v165, %v166
    %v168 = vshll.u32 2131351028, %v159
    %v169 = vshrl.u32 2102212464, %v160
    %v170 = vor.u32 %v168, %v169
    %v171 = vshll.u32 2102212464, %v159
    %v172 = vshrl.u32 920167782, %v160
    %v173 = vor.u32 %v171, %v172
    %v174 = vshll.u32 920167782, %v159
    %v175 = vshrl.u32 1326507024, %v160
    %v176 = vor.u32 %v174, %v175
    %vm177 = vcmp.lt.s32.totalorder %v158, 1
    %vm178 = vcmp.lt.s32.totalorder %v158, 2
    %vm179 = vcmp.lt.s32.totalorder %v158, 3
    %vm180 = vcmp.lt.s32.totalorder %v158, 4
    %v181 = vsel %vm177, %v161, %v164
    %v182 = vsel %vm180, %v170, 2102212464
    %v183 = vsel %vm179, %v167, %v182
    %v184 = vsel %vm178, %v181, %v183
    %v185 = vsel %vm177, %v164, %v167
    %v186 = vsel %vm180, %v173, 920167782
    %v187 = vsel %vm179, %v170, %v186
    %v188 = vsel %vm178, %v185, %v187
    %v189 = vsel %vm177, %v167, %v170
    %v190 = vsel %vm180, %v176, 1326507024
    %v191 = vsel %vm179, %v173, %v190
    %v192 = vsel %vm178, %v189, %v191
    %v193 = vshll.u32 %v153, 8
    %v194 = vmul.u32.u64.compose %v193, %v192
    %v195 = vextract.low.u32 %v194
    %v196 = vextract.high.u32 %v194
    %v197 = vmul.u32.u64.compose %v193, %v188
    %v198 = vextract.low.u32 %v197
    %v199 = vextract.high.u32 %v197
    %v200 = vmul.u32 %v193, %v184
    %v201 = vadd.s32 %v196, %v198
    %vm202 = vc.u32 %v196, %v198
    %v203 = vadd.s32 %v199, 1
    %v204 = vsel %vm202, %v203, %v199
    %v205 = vadd.s32 %v200, %v204
    %v206 = vadd.s32 %v205, 536870912
    %v207 = vshrl.u32 %v206, 30
    %v208 = vshll.u32 %v207, 30
    %v209 = vsub.s32 %v205, %v208
    %vm210 = vcmp.lt.s32.totalorder %v209, 0
    %v211 = vsub.s32 0, %v209
    %v212 = vsel %vm210, %v211, %v209
    %v213 = vclz %v212
    %v214 = vsub.s32 %v213, 2
    %vm215 = vcmp.gt.s32.totalorder 0, %v214
    %v216 = vsel %vm215, 0, %v214
    %v217 = vsub.s32 32, %v216
    %v218 = vshll.u32 %v209, %v216
    %v219 = vshrl.u32 %v201, %v217
    %v220 = vor.u32 %v218, %v219
    %v221 = vsub.s32 4294967266, %v216
    %v222 = vadd.s32 %v221, 127
    %v223 = vshll.u32 %v222, 23
    %v224 = vor.u32 4788187, %v223
    %v225 = vand.u32 2147483647, %v224
    %v227 = vcvt.s32.f32 %v220
    %v228 = vmul.f32 %v227, %v225
    %v229 = vxor.u32 %v228, 2147483648
    %v230 = vsel %vm147, %v229, %v228
    %v231 = vsub.s32 4, %v207
    %v232 = vsel %vm147, %v231, %v207
    %v233 = vsel %vm146, %v41, %v230
    %v234 = vsel %vm146, 0, %v232
    %v235 = vcosq.f32.pop %v233
    %v236 = vsinq.f32.pop %v233
    %vm237 = vweird.f32 %v41
    %v238 = vadd.s32 %v234, 3
    %v239 = vand.u32 %v238, 3
    %vm240 = vcmp.lt.s32.totalorder %v239, 2
    %vm241 = vcmp.eq.s32.totalorder %v239, 0
    %v242 = vxor.u32 %v236, 2147483648
    %v243 = vsel %vm241, %v235, %v242
    %vm244 = vcmp.eq.s32.totalorder %v239, 2
    %v245 = vxor.u32 %v235, 2147483648
    %v246 = vsel %vm244, %v245, %v236
    %v247 = vsel %vm240, %v243, %v246
    %v248 = vsel %vm237, nan, %v247
    %v249 = vlaneseq
    %v250 = vshrl.u32 %v249, 7
    %v251 = vsub.s32 0, %v250
    %v252 = vrot.slane %v28, %v251
    %v253 = vmul.f32 %v144, %v252
    %v254 = vlaneseq
    %v255 = vshrl.u32 %v254, 7
    %v256 = vsub.s32 1, %v255
    %v257 = vrot.slane %v28, %v256
    %v258 = vmul.f32 %v248, %v257
    %v259 = vsub.f32 %v253, %v258
    %v260 = vmul.f32 %v248, %v252
    %v261 = vmul.f32 %v144, %v257
    %v262 = vadd.f32 %v260, %v261
    %263 = vst [vmem:[#allocation5] sm:$0x3] %v259
    %264 = vst [vmem:[#allocation6] sm:$0x3] %v262
    // Predicated region
    $region14: #{tpu_custom_call.1} parent=1 // pred_check
      _
    $region15: #{tpu_custom_call.1} parent=1 // pred_check_branch
      %266 = sbr.rel (0) target = $region17
    $region16: #{tpu_custom_call.1} parent=1 // pred_region
      %s268 = ssub.s32 32, 32
      %269 = vsyncadd [#allocation4], %s268
      %s271 = sshll.u32 [#allocation5], 4
      %s272 = int_to_ptr.vmem [resolvable:$true] %s271
      %274 = dma.vmem_to_hbm [thread:$0]  %s272, 32, %s2, [#allocation4]
    $region17: #{tpu_custom_call.1} parent=1 // pred_fallthru
      _
    // Predicated region
    $region18: #{tpu_custom_call.1} parent=1 // pred_check
      _
    $region19: #{tpu_custom_call.1} parent=1 // pred_check_branch
      %276 = sbr.rel (0) target = $region21
    $region20: #{tpu_custom_call.1} parent=1 // pred_region
      %s278 = ssub.s32 32, 32
      %279 = vsyncadd [#allocation7], %s278
      %s281 = sshll.u32 [#allocation6], 4
      %s282 = int_to_ptr.vmem [resolvable:$true] %s281
      %284 = dma.vmem_to_hbm [thread:$0]  %s282, 32, %s3, [#allocation7]
    $region21: #{tpu_custom_call.1} parent=1 // pred_fallthru
      _
    // Predicated region
    $region22: #{tpu_custom_call.1} parent=1 // pred_check
      _
    $region23: #{tpu_custom_call.1} parent=1 // pred_check_branch
      %286 = sbr.rel (0) target = $region25
    $region24: #{tpu_custom_call.1} parent=1 // pred_region
      %287 = dma.done [#allocation4], 32
    $region25: #{tpu_custom_call.1} parent=1 // pred_fallthru
      _
    // Predicated region
    $region26: #{tpu_custom_call.1} parent=1 // pred_check
      _
    $region27: #{tpu_custom_call.1} parent=1 // pred_check_branch
      %289 = sbr.rel (0) target = $region29
    $region28: #{tpu_custom_call.1} parent=1 // pred_region
      %290 = dma.done [#allocation7], 32
    $region29: #{tpu_custom_call.1} parent=1 // pred_fallthru
      _
    %291 = vsyncpa [#allocation3], 1
    %292 = vsyncpa [#allocation4], 1
    %293 = vsyncpa [#allocation7], 1

</llo_original>
